<compile_context>
chip_gen: v6e
topology: v6e:2x2x1
jax: 0.10.0
libtpu: 0.0.40
codegen_flags: <defaults>
</compile_context>

<pallas_src>
import functools

import jax
import jax.numpy as jnp
from jax.experimental import pallas as pl
from jax.experimental.pallas import tpu as pltpu


def _round_up(x, m):
    return ((x + m - 1) // m) * m


def _bootstrap_ce_kernel(score_ref, label_ref, loss_ref, *, alpha, bootstrap_type):
    # score_ref: (C, TN) logits, label_ref: (1, TN) int32, loss_ref: (1, TN) f32.
    # Classes live on sublanes, samples on lanes -> all class reductions are
    # sublane reductions and the output block is lane-dense.
    x = score_ref[...].astype(jnp.float32)
    lbl = label_ref[...]                                       # (1, TN) int32
    c, tn = x.shape

    cls_idx = jax.lax.broadcasted_iota(jnp.int32, (c, tn), 0)  # class index per row
    cls_idx_f = cls_idx.astype(jnp.float32)

    # one-hot of the (possibly noisy) labels; broadcast (1,TN) against (C,TN)
    # NOTE: a negative "ignore" label (e.g. -1) yields an all-zero one-hot and
    # the row still contributes a full CE loss (same as the previous kernel).
    one_hot = (cls_idx == lbl).astype(jnp.float32)

    if bootstrap_type == "hard":
        # (sigmoid(x) > 0.5) <=> (x > 0): skip the sigmoid entirely.
        pred_part = (x > 0.0).astype(jnp.float32)
    else:  # "soft"
        pred_part = 1.0 / (1.0 + jnp.exp(-x))                  # exact sigmoid

    # convex combination of labels and model predictions
    bt = alpha * one_hot + (1.0 - alpha) * pred_part

    # argmax over the class (sublane) dim, first-maximal-index tie break
    # (matches torch.argmax / jnp.argmax). Float indices are exact for C < 2^24.
    bt_max = jnp.max(bt, axis=0, keepdims=True)
    tie_idx = jnp.where(bt == bt_max, cls_idx_f, jnp.float32(c))
    tgt = jnp.min(tie_idx, axis=0, keepdims=True)              # (1, TN) f32
    tgt_onehot = cls_idx_f == tgt

    # per-sample cross entropy: logsumexp(x) - x[target]  (stable log-softmax)
    m = jnp.max(x, axis=0, keepdims=True)
    lse = m + jnp.log(jnp.sum(jnp.exp(x - m), axis=0, keepdims=True))
    picked = jnp.sum(jnp.where(tgt_onehot, x, 0.0), axis=0, keepdims=True)

    loss_ref[...] = lse - picked                               # (1, TN) lane-dense


def _per_sample_loss(cls_score, label, *, alpha, bootstrap_type, tile_n=1024):
    """Per-sample bootstrapped CE, computed in a transposed [C, N] layout."""
    n, c = cls_score.shape

    # Tile sizing: lane-dense multiples of 128; clamp so tiny inputs don't
    # over-pad. For large N this gives many grid steps (pipelining + v7x 2-TC
    # sharding via the 'parallel' grid axis). For very large C, re-derive
    # tile_n against the v7x 64 MiB VMEM budget (double-buffered inputs).
    tile_n = min(tile_n, max(128, _round_up(n, 128)))
    n_pad = _round_up(n, tile_n)

    # Layout plumbing in the wrapper (not compute): samples -> lanes.
    # Keep the input dtype (bf16 logits stay bf16 on the HBM read; the kernel
    # upcasts to f32).
    score_t = jnp.transpose(cls_score)                         # (C, N)
    label_i = label.astype(jnp.int32)
    if n_pad != n:
        score_t = jnp.pad(score_t, ((0, 0), (0, n_pad - n)))
        label_i = jnp.pad(label_i, (0, n_pad - n))
    label2d = label_i.reshape(1, n_pad)

    kernel = functools.partial(
        _bootstrap_ce_kernel, alpha=alpha, bootstrap_type=bootstrap_type
    )

    out = pl.pallas_call(
        kernel,
        out_shape=jax.ShapeDtypeStruct((1, n_pad), jnp.float32),
        grid_spec=pltpu.PrefetchScalarGridSpec(
            num_scalar_prefetch=0,
            grid=(pl.cdiv(n_pad, tile_n),),
            in_specs=[
                pl.BlockSpec((c, tile_n), lambda i: (0, i)),   # full C, tile of N
                pl.BlockSpec((1, tile_n), lambda i: (0, i)),
            ],
            out_specs=pl.BlockSpec((1, tile_n), lambda i: (0, i)),
        ),
        compiler_params=pltpu.CompilerParams(
            dimension_semantics=("parallel",),
        ),
    )(score_t, label2d)
    return out[0, :n]


class BootstrappedSigmoidClassificationLoss:
    """JAX/Pallas port of the mmdet BootstrappedSigmoidClassificationLoss."""

    def __init__(self, alpha, bootstrap_type="soft", reduction="mean",
                 loss_weight=1.0):
        assert bootstrap_type in ("soft", "hard")
        self.alpha = float(alpha)
        self.bootstrap_type = bootstrap_type
        self.reduction = reduction
        self.loss_weight = loss_weight  # unused in the reference forward

    def __call__(self, cls_score, label, weight=None, avg_factor=None,
                 reduction_override=None):
        assert reduction_override in (None, "none", "mean", "sum")
        reduction = reduction_override if reduction_override else self.reduction

        per_row = _per_sample_loss(
            cls_score, label, alpha=self.alpha,
            bootstrap_type=self.bootstrap_type,
        )

        # Mirror the reference: F.cross_entropy(..., reduction=reduction) then
        # weight_reduce_loss(loss, weight, reduction, avg_factor). For a scalar
        # (mean/sum) the second reduction is a no-op, so a single reduction on
        # the per-row losses reproduces the same values exactly.
        if reduction == "mean":
            loss = jnp.mean(per_row)
        elif reduction == "sum":
            loss = jnp.sum(per_row)
        else:
            loss = per_row

        if weight is not None:
            # Matches the reference literally: weight multiplies the (already
            # reduced, for mean/sum) cross-entropy value.
            loss = loss * weight.astype(jnp.float32)

        if avg_factor is None:
            # reduce_loss(loss, reduction): no-op for scalars / 'none'
            if reduction == "mean":
                loss = jnp.mean(loss)
            elif reduction == "sum":
                loss = jnp.sum(loss)
        else:
            if reduction == "mean":
                loss = jnp.sum(loss) / avg_factor
            elif reduction != "none":
                raise ValueError("avg_factor can not be used with reduction='sum'")
        return loss


def _jax_reference(cls_score, label, alpha, bootstrap_type, reduction="mean"):
    c = cls_score.shape[-1]
    one_hot = jax.nn.one_hot(label, c, dtype=cls_score.dtype)
    sig = jax.nn.sigmoid(cls_score)
    if bootstrap_type == "soft":
        bt = alpha * one_hot + (1.0 - alpha) * sig
    else:
        bt = alpha * one_hot + (1.0 - alpha) * (sig > 0.5).astype(cls_score.dtype)
    tgt = jnp.argmax(bt, axis=1)
    logp = jax.nn.log_softmax(cls_score, axis=-1)
    per_row = -jnp.take_along_axis(logp, tgt[:, None], axis=1)[:, 0]
    if reduction == "mean":
        return jnp.mean(per_row)
    if reduction == "sum":
        return jnp.sum(per_row)
    return per_row


if __name__ == "__main__":
    key = jax.random.PRNGKey(0)
    k1, k2, k3, k4 = jax.random.split(key, 4)

    # samples x num_classes, as implied by the (N, C) forward
    N, C = 128, 16
    cls_score = jax.random.normal(k1, (N, C), dtype=jnp.float32) * 2.0
    label = jax.random.randint(k2, (N,), 0, C, dtype=jnp.int32)

    # soft bootstrap, mean reduction
    loss_soft = BootstrappedSigmoidClassificationLoss(
        alpha=0.5, bootstrap_type="soft", reduction="mean"
    )(cls_score, label)
    loss_soft = jax.block_until_ready(loss_soft)
    ref_soft = _jax_reference(cls_score, label, 0.5, "soft", "mean")
    ref_soft = jax.block_until_ready(ref_soft)
    assert jnp.allclose(loss_soft, ref_soft, rtol=1e-5, atol=1e-5), (loss_soft, ref_soft)

    # hard bootstrap, mean reduction
    loss_hard = BootstrappedSigmoidClassificationLoss(
        alpha=0.3, bootstrap_type="hard", reduction="mean"
    )(cls_score, label)
    loss_hard = jax.block_until_ready(loss_hard)
    ref_hard = _jax_reference(cls_score, label, 0.3, "hard", "mean")
    assert jnp.allclose(loss_hard, ref_hard, rtol=1e-5, atol=1e-5), (loss_hard, ref_hard)

    # padding path (N not a multiple of 128), reduction='none'
    N2, C2 = 200, 10
    s2 = jax.random.normal(k3, (N2, C2), dtype=jnp.float32)
    l2 = jax.random.randint(k4, (N2,), 0, C2, dtype=jnp.int32)
    loss_none = BootstrappedSigmoidClassificationLoss(
        alpha=0.7, bootstrap_type="soft", reduction="none"
    )(s2, l2)
    loss_none = jax.block_until_ready(loss_none)
    ref_none = _jax_reference(s2, l2, 0.7, "soft", "none")
    assert loss_none.shape == (N2,)
    assert jnp.allclose(loss_none, ref_none, rtol=1e-5, atol=1e-5)

    # TODO(synk): if callers pass a per-sample `weight` with reduction='mean'/'sum',
    # the reference (and this port) applies it after the reduction, which differs
    # from element-wise weighting; kept identical to the PyTorch module.

    print("KERNEL_OK")
</pallas_src>

<mosaic_0001>
module attributes {stable_mosaic.version = 11 : i64} {
  func.func @_bootstrap_ce_kernel(%arg0: i32, %arg1: memref<16x128xf32, #tpu.memory_space<vmem>>, %arg2: memref<1x128xi32, #tpu.memory_space<vmem>>, %arg3: memref<1x128xf32, #tpu.memory_space<vmem>>) attributes {dimension_semantics = [#tpu.dimension_semantics<parallel>], iteration_bounds = array<i64: 1>, scalar_prefetch = 0 : i64, scratch_operands = 0 : i64, tpu.core_type = #tpu.core_type<tc>, window_params = [{transform_indices = @transform_0, window_bounds = array<i64: 16, 128>}, {transform_indices = @transform_1, window_bounds = array<i64: 1, 128>}, {transform_indices = @transform_2, window_bounds = array<i64: 1, 128>}]} {
    %c0 = arith.constant 0 : index
    %c0_0 = arith.constant 0 : index
    %0 = vector.load %arg1[%c0, %c0_0] : memref<16x128xf32, #tpu.memory_space<vmem>>, vector<16x128xf32>
    %c0_1 = arith.constant 0 : index
    %c0_2 = arith.constant 0 : index
    %1 = vector.load %arg2[%c0_1, %c0_2] : memref<1x128xi32, #tpu.memory_space<vmem>>, vector<1x128xi32>
    %2 = tpu.iota {dimensions = array<i32: 0>} : vector<16x128xi32>
    %3 = arith.sitofp %2 : vector<16x128xi32> to vector<16x128xf32>
    %4 = vector.broadcast %1 : vector<1x128xi32> to vector<16x128xi32>
    %5 = arith.cmpi eq, %2, %4 : vector<16x128xi32>
    %6 = arith.extui %5 : vector<16x128xi1> to vector<16x128xi32>
    %7 = arith.sitofp %6 : vector<16x128xi32> to vector<16x128xf32>
    %cst = arith.constant 0.000000e+00 : f32
    %8 = vector.broadcast %cst : f32 to vector<16x128xf32>
    %9 = arith.subf %8, %0 : vector<16x128xf32>
    %10 = math.exp %9 : vector<16x128xf32>
    %cst_3 = arith.constant 1.000000e+00 : f32
    %11 = vector.broadcast %cst_3 : f32 to vector<16x128xf32>
    %12 = arith.addf %11, %10 : vector<16x128xf32>
    %cst_4 = arith.constant 1.000000e+00 : f32
    %13 = vector.broadcast %cst_4 : f32 to vector<16x128xf32>
    %14 = arith.divf %13, %12 : vector<16x128xf32>
    %cst_5 = arith.constant 5.000000e-01 : f32
    %15 = vector.broadcast %cst_5 : f32 to vector<16x128xf32>
    %16 = arith.mulf %15, %7 : vector<16x128xf32>
    %cst_6 = arith.constant 5.000000e-01 : f32
    %17 = vector.broadcast %cst_6 : f32 to vector<16x128xf32>
    %18 = arith.mulf %17, %14 : vector<16x128xf32>
    %19 = arith.addf %16, %18 : vector<16x128xf32>
    %cst_7 = arith.constant dense<0xFF800000> : vector<128xf32>
    %20 = vector.multi_reduction <maximumf>, %19, %cst_7 [0] : vector<16x128xf32> to vector<128xf32>
    %21 = vector.shape_cast %20 : vector<128xf32> to vector<1x128xf32>
    %22 = vector.broadcast %21 : vector<1x128xf32> to vector<16x128xf32>
    %23 = arith.cmpf oeq, %19, %22 : vector<16x128xf32>
    %cst_8 = arith.constant 1.600000e+01 : f32
    %24 = vector.broadcast %cst_8 : f32 to vector<16x128xf32>
    %25 = arith.select %23, %3, %24 : vector<16x128xi1>, vector<16x128xf32>
    %cst_9 = arith.constant dense<0x7F800000> : vector<128xf32>
    %26 = vector.multi_reduction <minimumf>, %25, %cst_9 [0] : vector<16x128xf32> to vector<128xf32>
    %27 = vector.shape_cast %26 : vector<128xf32> to vector<1x128xf32>
    %28 = vector.broadcast %27 : vector<1x128xf32> to vector<16x128xf32>
    %29 = arith.cmpf oeq, %3, %28 : vector<16x128xf32>
    %cst_10 = arith.constant dense<0xFF800000> : vector<128xf32>
    %30 = vector.multi_reduction <maximumf>, %0, %cst_10 [0] : vector<16x128xf32> to vector<128xf32>
    %31 = vector.shape_cast %30 : vector<128xf32> to vector<1x128xf32>
    %32 = vector.broadcast %31 : vector<1x128xf32> to vector<16x128xf32>
    %33 = arith.subf %0, %32 : vector<16x128xf32>
    %34 = math.exp %33 : vector<16x128xf32>
    %cst_11 = arith.constant dense<0.000000e+00> : vector<128xf32>
    %35 = vector.multi_reduction <add>, %34, %cst_11 [0] : vector<16x128xf32> to vector<128xf32>
    %36 = vector.shape_cast %35 : vector<128xf32> to vector<1x128xf32>
    %37 = math.log %36 : vector<1x128xf32>
    %38 = arith.addf %31, %37 : vector<1x128xf32>
    %cst_12 = arith.constant 0.000000e+00 : f32
    %39 = vector.broadcast %cst_12 : f32 to vector<16x128xf32>
    %40 = arith.select %29, %0, %39 : vector<16x128xi1>, vector<16x128xf32>
    %cst_13 = arith.constant dense<0.000000e+00> : vector<128xf32>
    %41 = vector.multi_reduction <add>, %40, %cst_13 [0] : vector<16x128xf32> to vector<128xf32>
    %42 = vector.shape_cast %41 : vector<128xf32> to vector<1x128xf32>
    %43 = arith.subf %38, %42 : vector<1x128xf32>
    %c0_14 = arith.constant 0 : index
    %c0_15 = arith.constant 0 : index
    %44 = vector.load %arg3[%c0_14, %c0_15] : memref<1x128xf32, #tpu.memory_space<vmem>>, vector<1x128xf32>
    tpu.vector_store %arg3[%c0_14, %c0_15], %43 {strides = array<i32>} : memref<1x128xf32, #tpu.memory_space<vmem>>, vector<1x128xf32>,
    return
  }
  func.func @transform_0(%arg0: i32) -> (i32, i32) {
    %c0_i32 = arith.constant 0 : i32
    %c0_i32_0 = arith.constant 0 : i32
    return %c0_i32, %arg0 : i32, i32
  }
  func.func @transform_1(%arg0: i32) -> (i32, i32) {
    %c0_i32 = arith.constant 0 : i32
    %c0_i32_0 = arith.constant 0 : i32
    return %c0_i32, %arg0 : i32, i32
  }
  func.func @transform_2(%arg0: i32) -> (i32, i32) {
    %c0_i32 = arith.constant 0 : i32
    %c0_i32_0 = arith.constant 0 : i32
    return %c0_i32, %arg0 : i32, i32
  }
}

</mosaic_0001>

<llo_original>
// kernel: tpu_custom_call.1
$region0: #{tpu_custom_call.1}
  #allocation0 [shape = 'u32[]', space=smem, size = 0x4, offset = 0x4, fixed_abs, tag = 'smem constant byte address 0x4 - core index']
  #allocation1 [shape = 'u32[144,128]{1,0:T(1,128)}', space=vmem, size = 0x12000, scoped, tag = 'internal scratch']
  %s0 = inlined_call_operand.hbm [shape: f32[16,128], index: 0, kind: input, shape index: {}]
  %s1 = inlined_call_operand.vmem [shape: s32[1,128], index: 1, kind: input, shape index: {}]
  %s2 = inlined_call_operand.hbm [shape: f32[1,128], index: 2, kind: output, shape index: {}]
  %s3 = sld [smem:[#allocation0]]
  $region22: #{tpu_custom_call.1} parent=0
    _
  %s5 = ssub.s32 1, %s3
  %s6 = scalar_select 0, %s5, %s3
  $region1: #{tpu_custom_call.1} parent=0
    #allocation2 [shape = 'u8[8192]{0}', space=vmem, size = 0x2000, scoped, tag = 'input window, operand 0, single buffered']
    #allocation3 [shape = 's32[1]{0}', space=sflag, size = 0x4, scoped, tag = 'scoped memory for tpu_custom_call.1']
    #allocation4 [shape = 's32[1]{0}', space=sflag, size = 0x4, scoped, tag = 'scoped memory for tpu_custom_call.1']
    #allocation5 [shape = 'u8[512]{0}', space=vmem, size = 0x400, scoped, tag = 'output window, operand 0, single buffered']
    %7 = vsyncpa [#allocation3], 0
    %8 = vsyncpa [#allocation4], 0
    // Predicated region
    $region2: #{tpu_custom_call.1} parent=1 // pred_check
      _
    $region3: #{tpu_custom_call.1} parent=1 // pred_check_branch
      %10 = sbr.rel (0) target = $region5
    $region4: #{tpu_custom_call.1} parent=1 // pred_region
      %s12 = ssub.s32 256, 256
      %13 = vsyncadd [#allocation3], %s12
      %s14 = sshll.u32 [#allocation2], 4
      %s15 = int_to_ptr.vmem [resolvable:$true] %s14
      %20 = dma.hbm_to_vmem [thread:$0]  %s0, 256, %s15, [#allocation3], 128, 128, 8
    $region5: #{tpu_custom_call.1} parent=1 // pred_fallthru
      _
    // Predicated region
    $region6: #{tpu_custom_call.1} parent=1 // pred_check
      _
    $region7: #{tpu_custom_call.1} parent=1 // pred_check_branch
      %22 = sbr.rel (0) target = $region9
    $region8: #{tpu_custom_call.1} parent=1 // pred_region
      _
    $region9: #{tpu_custom_call.1} parent=1 // pred_fallthru
      _
    // Predicated region
    $region10: #{tpu_custom_call.1} parent=1 // pred_check
      _
    $region11: #{tpu_custom_call.1} parent=1 // pred_check_branch
      %24 = sbr.rel (0) target = $region13
    $region12: #{tpu_custom_call.1} parent=1 // pred_region
      %25 = dma.done [#allocation3], 256
    $region13: #{tpu_custom_call.1} parent=1 // pred_fallthru
      _
    %v26 = vld [vmem:[#allocation2] sm:$0xff]
    %v27 = vld [vmem:[#allocation2 + $0x8] sm:$0xff]
    %v28 = vld [vmem:[%s1] sm:$0x1]
    %v29 = vlaneseq
    %v30 = vshrl.u32 %v29, 7
    %v31 = vadd.s32 %v30, 8
    %v32 = vcvt.s32.f32 %v30
    %v33 = vcvt.s32.f32 %v31
    %v34 = vlaneseq
    %v35 = vshrl.u32 %v34, 7
    %v36 = vsub.s32 0, %v35
    %v37 = vrot.slane %v28, %v36
    %vm38 = vcmp.eq.s32.totalorder %v30, %v37
    %vm39 = vcmp.eq.s32.totalorder %v31, %v37
    %v40 = vsel %vm38, 1, 0
    %v41 = vsel %vm39, 1, 0
    %v42 = vcvt.s32.f32 %v40
    %v43 = vcvt.s32.f32 %v41
    %v44 = vsub.f32 0.0, %v26
    %v45 = vsub.f32 0.0, %v27
    %v46 = vmul.f32 %v44, 1.442695
    %v47 = vpow.pop %v46
    %v48 = vmul.f32 %v45, 1.442695
    %v49 = vpow.pop %v48
    %v50 = vadd.f32 %v47, 1.0
    %v51 = vadd.f32 %v49, 1.0
    %v52 = vrcp.pop %v50
    %v53 = vmul.f32 1.0, %v52
    %v54 = vrcp.pop %v51
    %v55 = vmul.f32 1.0, %v54
    %v56 = vmul.f32 %v42, 0.5
    %v57 = vmul.f32 %v43, 0.5
    %v58 = vmul.f32 %v53, 0.5
    %v59 = vmul.f32 %v55, 0.5
    %v60 = vadd.f32 %v56, %v58
    %v61 = vadd.f32 %v57, %v59
    %v62 = vmax.f32 %v60, %v61
    %v63 = vrot.slane %v62, 4
    %v64 = vmax.f32 %v62, %v63
    %v65 = vrot.slane %v64, 2
    %v66 = vmax.f32 %v64, %v65
    %v67 = vrot.slane %v66, 1
    %v68 = vmax.f32 %v66, %v67
    %vm69 = vcmp.eq.f32.partialorder %v60, %v68
    %vm70 = vcmp.eq.f32.partialorder %v61, %v68
    %v71 = vsel %vm69, %v32, 16.0
    %v72 = vsel %vm70, %v33, 16.0
    %v73 = vmin.f32 %v71, %v72
    %v74 = vrot.slane %v73, 4
    %v75 = vmin.f32 %v73, %v74
    %v76 = vrot.slane %v75, 2
    %v77 = vmin.f32 %v75, %v76
    %v78 = vrot.slane %v77, 1
    %v79 = vmin.f32 %v77, %v78
    %vm80 = vcmp.eq.f32.partialorder %v32, %v79
    %vm81 = vcmp.eq.f32.partialorder %v33, %v79
    %v82 = vmax.f32 %v26, %v27
    %v83 = vrot.slane %v82, 4
    %v84 = vmax.f32 %v82, %v83
    %v85 = vrot.slane %v84, 2
    %v86 = vmax.f32 %v84, %v85
    %v87 = vrot.slane %v86, 1
    %v88 = vmax.f32 %v86, %v87
    %v89 = vsub.f32 %v26, %v88
    %v90 = vsub.f32 %v27, %v88
    %v91 = vmul.f32 %v89, 1.442695
    %v92 = vpow.pop %v91
    %v93 = vmul.f32 %v90, 1.442695
    %v94 = vpow.pop %v93
    %v95 = vadd.f32 %v92, %v94
    %v96 = vrot.slane %v95, 4
    %v97 = vadd.f32 %v95, %v96
    %v98 = vrot.slane %v97, 2
    %v99 = vadd.f32 %v97, %v98
    %v100 = vrot.slane %v99, 1
    %v101 = vadd.f32 %v99, %v100
    %v102 = vlog2.pop %v101
    %v103 = vmul.f32 %v102, 0.6931472
    %v104 = vadd.f32 %v88, %v103
    %v105 = vsel %vm80, %v26, 0.0
    %v106 = vsel %vm81, %v27, 0.0
    %v107 = vadd.f32 %v105, %v106
    %v108 = vrot.slane %v107, 4
    %v109 = vadd.f32 %v107, %v108
    %v110 = vrot.slane %v109, 2
    %v111 = vadd.f32 %v109, %v110
    %v112 = vrot.slane %v111, 1
    %v113 = vadd.f32 %v111, %v112
    %v114 = vsub.f32 %v104, %v113
    %115 = vst [vmem:[#allocation5] sm:$0x1] %v114
    // Predicated region
    $region14: #{tpu_custom_call.1} parent=1 // pred_check
      _
    $region15: #{tpu_custom_call.1} parent=1 // pred_check_branch
      %117 = sbr.rel (0) target = $region17
    $region16: #{tpu_custom_call.1} parent=1 // pred_region
      %s119 = ssub.s32 16, 16
      %120 = vsyncadd [#allocation4], %s119
      %s122 = sshll.u32 [#allocation5], 4
      %s123 = int_to_ptr.vmem [resolvable:$true] %s122
      %125 = dma.vmem_to_hbm [thread:$0]  %s123, 16, %s2, [#allocation4]
    $region17: #{tpu_custom_call.1} parent=1 // pred_fallthru
      _
    // Predicated region
    $region18: #{tpu_custom_call.1} parent=1 // pred_check
      _
    $region19: #{tpu_custom_call.1} parent=1 // pred_check_branch
      %127 = sbr.rel (0) target = $region21
    $region20: #{tpu_custom_call.1} parent=1 // pred_region
      %128 = dma.done [#allocation4], 16
    $region21: #{tpu_custom_call.1} parent=1 // pred_fallthru
      _
    %129 = vsyncpa [#allocation3], 1
    %130 = vsyncpa [#allocation4], 1

</llo_original>
